<compile_context>
chip_gen: v7x
topology: tpu7x:2x2x1
jax: 0.10.0
libtpu: 0.0.40
codegen_flags: <defaults>
</compile_context>

<pallas_src>
import jax
import jax.numpy as jnp
from jax import lax
from jax.experimental import pallas as pl
from jax.experimental.pallas import tpu as pltpu


def _make_cr_kernel(ks, pad, H, W, C_in, C_out):
    H_pad, W_pad = H + 2 * pad, W + 2 * pad
    H_out = H_pad - ks + 1
    HWW = H_out * W_pad          # "wide" flattened spatial extent (lane axis)
    HW = H * W

    def kernel(x_ref, w_ref, b_ref, o_ref, xflat_ref, patch_ref):
        # x_ref:     (1, C_in, H*W)          flattened NCHW image (lane-dense)
        # w_ref:     (C_out, ks*ks*C_in)     taps folded into contraction dim
        # b_ref:     (C_out, 1)
        # o_ref:     (1, C_out, HWW)         wide NCHW-flat output
        # xflat_ref: (C_in, (H_pad+1)*W_pad) zero-padded row-major image
        # patch_ref: (ks*ks*C_in, HWW)       im2col matrix

        # ---- in-kernel zero padding into the flat padded scratch ------------
        xflat_ref[...] = jnp.zeros_like(xflat_ref)
        if pad == 0:
            xflat_ref[:, :HW] = x_ref[0]
        else:
            for h in range(H):                      # static loop, H row copies
                dst = (h + pad) * W_pad + pad
                xflat_ref[:, dst:dst + W] = x_ref[0, :, h * W:(h + 1) * W]

        # ---- im2col: every tap is a contiguous lane-slice of the flat image -
        for ki in range(ks):
            for kj in range(ks):
                t = ki * ks + kj
                off = ki * W_pad + kj
                patch_ref[t * C_in:(t + 1) * C_in, :] = xflat_ref[:, off:off + HWW]

        # ---- single MXU matmul (K = ks*ks*C_in), spatial stays on lanes ------
        acc = jnp.dot(w_ref[...], patch_ref[...],
                      preferred_element_type=jnp.float32)       # (C_out, HWW)
        acc = acc + b_ref[...]                                   # bias (lane bcast)
        acc = jnp.maximum(acc, 0.0)                              # fused ReLU
        o_ref[...] = acc.reshape(1, C_out, HWW).astype(o_ref.dtype)

    return kernel


def cr_bb_forward(x_nchw, weight_oihw, bias, ks, pad):
    """CR_BB.forward: Conv2d(in, out, ks, padding=pad) followed by ReLU (NCHW)."""
    N, C_in, H, W = x_nchw.shape
    C_out = weight_oihw.shape[0]
    H_pad, W_pad = H + 2 * pad, W + 2 * pad
    H_out, W_out = H_pad - ks + 1, W_pad - ks + 1
    HWW = H_out * W_pad
    K = ks * ks * C_in

    # Free reshape (NCHW is contiguous): lane-dense spatial axis for the kernel.
    x_flat = x_nchw.reshape(N, C_in, H * W).astype(jnp.float32)
    # (C_out, C_in, ks, ks) -> (C_out, ks*ks*C_in), tap-major ordering to match
    # the in-kernel im2col row order (t = ki*ks + kj, then channel).
    w2 = jnp.transpose(weight_oihw, (0, 2, 3, 1)).reshape(C_out, K).astype(jnp.float32)
    b2 = bias.reshape(C_out, 1).astype(jnp.float32)

    kernel = _make_cr_kernel(ks, pad, H, W, C_in, C_out)
    out_wide = pl.pallas_call(
        kernel,
        out_shape=jax.ShapeDtypeStruct((N, C_out, HWW), jnp.float32),
        grid=(N,),
        in_specs=[
            pl.BlockSpec((1, C_in, H * W), lambda n: (n, 0, 0)),
            pl.BlockSpec((C_out, K), lambda n: (0, 0)),
            pl.BlockSpec((C_out, 1), lambda n: (0, 0)),
        ],
        out_specs=pl.BlockSpec((1, C_out, HWW), lambda n: (n, 0, 0)),
        scratch_shapes=[
            pltpu.VMEM((C_in, (H_pad + 1) * W_pad), jnp.float32),  # flat padded img
            pltpu.VMEM((K, HWW), jnp.float32),                     # im2col matrix
        ],
        compiler_params=pltpu.CompilerParams(dimension_semantics=("parallel",)),
    )(x_flat, w2, b2)

    # (N, C_out, H_out*W_pad) -> (N, C_out, H_out, W_pad) is a free reshape;
    # dropping the ks-1 wrap-around columns gives the true NCHW output.
    return out_wide.reshape(N, C_out, H_out, W_pad)[:, :, :, :W_out]


if __name__ == "__main__":
    # Module hyper-parameters (small, consistent with CR_BB.__init__).
    in_channel, out_channel, ks, pad = 4, 8, 3, 1
    N, H, W = 2, 16, 16

    key = jax.random.PRNGKey(0)
    k1, k2, k3 = jax.random.split(key, 3)
    x = jax.random.normal(k1, (N, in_channel, H, W), jnp.float32)
    w = jax.random.normal(k2, (out_channel, in_channel, ks, ks), jnp.float32) * 0.1
    b = jax.random.normal(k3, (out_channel,), jnp.float32) * 0.1

    out = cr_bb_forward(x, w, b, ks, pad)
    jax.block_until_ready(out)

    H_out = H + 2 * pad - ks + 1
    assert out.shape == (N, out_channel, H_out, H_out), out.shape

    # Numerical reference: XLA conv + bias + ReLU (same math as nn.Conv2d+ReLU).
    out_ref = lax.conv_general_dilated(
        x, w, window_strides=(1, 1), padding=[(pad, pad), (pad, pad)],
        dimension_numbers=("NCHW", "OIHW", "NCHW")) + b.reshape(1, out_channel, 1, 1)
    out_ref = jnp.maximum(out_ref, 0.0)

    assert jnp.allclose(out, out_ref, rtol=1e-4, atol=1e-4), \
        float(jnp.max(jnp.abs(out - out_ref)))
    print("KERNEL_OK")
</pallas_src>

<mosaic_0001>
module attributes {stable_mosaic.version = 11 : i64} {
  func.func @kernel(%arg0: i32, %arg1: memref<1x4x256xf32, #tpu.memory_space<vmem>>, %arg2: memref<8x36xf32, #tpu.memory_space<vmem>>, %arg3: memref<8x1xf32, #tpu.memory_space<vmem>>, %arg4: memref<1x8x288xf32, #tpu.memory_space<vmem>>, %arg5: memref<4x342xf32, #tpu.memory_space<vmem>>, %arg6: memref<36x288xf32, #tpu.memory_space<vmem>>) attributes {dimension_semantics = [#tpu.dimension_semantics<parallel>], iteration_bounds = array<i64: 2>, scalar_prefetch = 0 : i64, scratch_operands = 2 : i64, tpu.core_type = #tpu.core_type<tc>, window_params = [{transform_indices = @transform_0, window_bounds = array<i64: 1, 4, 256>}, {pipeline_mode = #tpu.pipeline_mode<synchronous>, transform_indices = @transform_1, window_bounds = array<i64: 8, 36>}, {pipeline_mode = #tpu.pipeline_mode<synchronous>, transform_indices = @transform_2, window_bounds = array<i64: 8, 1>}, {transform_indices = @transform_3, window_bounds = array<i64: 1, 8, 288>}]} {
    %cst = arith.constant 0.000000e+00 : f32
    %0 = vector.broadcast %cst : f32 to vector<4x342xf32>
    %c0 = arith.constant 0 : index
    %c0_0 = arith.constant 0 : index
    %1 = vector.load %arg5[%c0, %c0_0] : memref<4x342xf32, #tpu.memory_space<vmem>>, vector<4x342xf32>
    tpu.vector_store %arg5[%c0, %c0_0], %0 {strides = array<i32>} : memref<4x342xf32, #tpu.memory_space<vmem>>, vector<4x342xf32>,
    %c0_1 = arith.constant 0 : index
    %c0_2 = arith.constant 0 : index
    %c0_3 = arith.constant 0 : index
    %2 = vector.load %arg1[%c0_1, %c0_2, %c0_3] : memref<1x4x256xf32, #tpu.memory_space<vmem>>, vector<1x4x16xf32>
    %3 = vector.shape_cast %2 : vector<1x4x16xf32> to vector<4x16xf32>
    %c0_4 = arith.constant 0 : index
    %c19 = arith.constant 19 : index
    %4 = vector.load %arg5[%c0_4, %c19] : memref<4x342xf32, #tpu.memory_space<vmem>>, vector<4x16xf32>
    tpu.vector_store %arg5[%c0_4, %c19], %3 {strides = array<i32>} : memref<4x342xf32, #tpu.memory_space<vmem>>, vector<4x16xf32>,
    %c0_5 = arith.constant 0 : index
    %c0_6 = arith.constant 0 : index
    %c16 = arith.constant 16 : index
    %5 = vector.load %arg1[%c0_5, %c0_6, %c16] : memref<1x4x256xf32, #tpu.memory_space<vmem>>, vector<1x4x16xf32>
    %6 = vector.shape_cast %5 : vector<1x4x16xf32> to vector<4x16xf32>
    %c0_7 = arith.constant 0 : index
    %c37 = arith.constant 37 : index
    %7 = vector.load %arg5[%c0_7, %c37] : memref<4x342xf32, #tpu.memory_space<vmem>>, vector<4x16xf32>
    tpu.vector_store %arg5[%c0_7, %c37], %6 {strides = array<i32>} : memref<4x342xf32, #tpu.memory_space<vmem>>, vector<4x16xf32>,
    %c0_8 = arith.constant 0 : index
    %c0_9 = arith.constant 0 : index
    %c32 = arith.constant 32 : index
    %8 = vector.load %arg1[%c0_8, %c0_9, %c32] : memref<1x4x256xf32, #tpu.memory_space<vmem>>, vector<1x4x16xf32>
    %9 = vector.shape_cast %8 : vector<1x4x16xf32> to vector<4x16xf32>
    %c0_10 = arith.constant 0 : index
    %c55 = arith.constant 55 : index
    %10 = vector.load %arg5[%c0_10, %c55] : memref<4x342xf32, #tpu.memory_space<vmem>>, vector<4x16xf32>
    tpu.vector_store %arg5[%c0_10, %c55], %9 {strides = array<i32>} : memref<4x342xf32, #tpu.memory_space<vmem>>, vector<4x16xf32>,
    %c0_11 = arith.constant 0 : index
    %c0_12 = arith.constant 0 : index
    %c48 = arith.constant 48 : index
    %11 = vector.load %arg1[%c0_11, %c0_12, %c48] : memref<1x4x256xf32, #tpu.memory_space<vmem>>, vector<1x4x16xf32>
    %12 = vector.shape_cast %11 : vector<1x4x16xf32> to vector<4x16xf32>
    %c0_13 = arith.constant 0 : index
    %c73 = arith.constant 73 : index
    %13 = vector.load %arg5[%c0_13, %c73] : memref<4x342xf32, #tpu.memory_space<vmem>>, vector<4x16xf32>
    tpu.vector_store %arg5[%c0_13, %c73], %12 {strides = array<i32>} : memref<4x342xf32, #tpu.memory_space<vmem>>, vector<4x16xf32>,
    %c0_14 = arith.constant 0 : index
    %c0_15 = arith.constant 0 : index
    %c64 = arith.constant 64 : index
    %14 = vector.load %arg1[%c0_14, %c0_15, %c64] : memref<1x4x256xf32, #tpu.memory_space<vmem>>, vector<1x4x16xf32>
    %15 = vector.shape_cast %14 : vector<1x4x16xf32> to vector<4x16xf32>
    %c0_16 = arith.constant 0 : index
    %c91 = arith.constant 91 : index
    %16 = vector.load %arg5[%c0_16, %c91] : memref<4x342xf32, #tpu.memory_space<vmem>>, vector<4x16xf32>
    tpu.vector_store %arg5[%c0_16, %c91], %15 {strides = array<i32>} : memref<4x342xf32, #tpu.memory_space<vmem>>, vector<4x16xf32>,
    %c0_17 = arith.constant 0 : index
    %c0_18 = arith.constant 0 : index
    %c80 = arith.constant 80 : index
    %17 = vector.load %arg1[%c0_17, %c0_18, %c80] : memref<1x4x256xf32, #tpu.memory_space<vmem>>, vector<1x4x16xf32>
    %18 = vector.shape_cast %17 : vector<1x4x16xf32> to vector<4x16xf32>
    %c0_19 = arith.constant 0 : index
    %c109 = arith.constant 109 : index
    %19 = vector.load %arg5[%c0_19, %c109] : memref<4x342xf32, #tpu.memory_space<vmem>>, vector<4x16xf32>
    tpu.vector_store %arg5[%c0_19, %c109], %18 {strides = array<i32>} : memref<4x342xf32, #tpu.memory_space<vmem>>, vector<4x16xf32>,
    %c0_20 = arith.constant 0 : index
    %c0_21 = arith.constant 0 : index
    %c96 = arith.constant 96 : index
    %20 = vector.load %arg1[%c0_20, %c0_21, %c96] : memref<1x4x256xf32, #tpu.memory_space<vmem>>, vector<1x4x16xf32>
    %21 = vector.shape_cast %20 : vector<1x4x16xf32> to vector<4x16xf32>
    %c0_22 = arith.constant 0 : index
    %c127 = arith.constant 127 : index
    %22 = vector.load %arg5[%c0_22, %c127] : memref<4x342xf32, #tpu.memory_space<vmem>>, vector<4x16xf32>
    tpu.vector_store %arg5[%c0_22, %c127], %21 {strides = array<i32>} : memref<4x342xf32, #tpu.memory_space<vmem>>, vector<4x16xf32>,
    %c0_23 = arith.constant 0 : index
    %c0_24 = arith.constant 0 : index
    %c112 = arith.constant 112 : index
    %23 = vector.load %arg1[%c0_23, %c0_24, %c112] : memref<1x4x256xf32, #tpu.memory_space<vmem>>, vector<1x4x16xf32>
    %24 = vector.shape_cast %23 : vector<1x4x16xf32> to vector<4x16xf32>
    %c0_25 = arith.constant 0 : index
    %c145 = arith.constant 145 : index
    %25 = vector.load %arg5[%c0_25, %c145] : memref<4x342xf32, #tpu.memory_space<vmem>>, vector<4x16xf32>
    tpu.vector_store %arg5[%c0_25, %c145], %24 {strides = array<i32>} : memref<4x342xf32, #tpu.memory_space<vmem>>, vector<4x16xf32>,
    %c0_26 = arith.constant 0 : index
    %c0_27 = arith.constant 0 : index
    %c128 = arith.constant 128 : index
    %26 = vector.load %arg1[%c0_26, %c0_27, %c128] : memref<1x4x256xf32, #tpu.memory_space<vmem>>, vector<1x4x16xf32>
    %27 = vector.shape_cast %26 : vector<1x4x16xf32> to vector<4x16xf32>
    %c0_28 = arith.constant 0 : index
    %c163 = arith.constant 163 : index
    %28 = vector.load %arg5[%c0_28, %c163] : memref<4x342xf32, #tpu.memory_space<vmem>>, vector<4x16xf32>
    tpu.vector_store %arg5[%c0_28, %c163], %27 {strides = array<i32>} : memref<4x342xf32, #tpu.memory_space<vmem>>, vector<4x16xf32>,
    %c0_29 = arith.constant 0 : index
    %c0_30 = arith.constant 0 : index
    %c144 = arith.constant 144 : index
    %29 = vector.load %arg1[%c0_29, %c0_30, %c144] : memref<1x4x256xf32, #tpu.memory_space<vmem>>, vector<1x4x16xf32>
    %30 = vector.shape_cast %29 : vector<1x4x16xf32> to vector<4x16xf32>
    %c0_31 = arith.constant 0 : index
    %c181 = arith.constant 181 : index
    %31 = vector.load %arg5[%c0_31, %c181] : memref<4x342xf32, #tpu.memory_space<vmem>>, vector<4x16xf32>
    tpu.vector_store %arg5[%c0_31, %c181], %30 {strides = array<i32>} : memref<4x342xf32, #tpu.memory_space<vmem>>, vector<4x16xf32>,
    %c0_32 = arith.constant 0 : index
    %c0_33 = arith.constant 0 : index
    %c160 = arith.constant 160 : index
    %32 = vector.load %arg1[%c0_32, %c0_33, %c160] : memref<1x4x256xf32, #tpu.memory_space<vmem>>, vector<1x4x16xf32>
    %33 = vector.shape_cast %32 : vector<1x4x16xf32> to vector<4x16xf32>
    %c0_34 = arith.constant 0 : index
    %c199 = arith.constant 199 : index
    %34 = vector.load %arg5[%c0_34, %c199] : memref<4x342xf32, #tpu.memory_space<vmem>>, vector<4x16xf32>
    tpu.vector_store %arg5[%c0_34, %c199], %33 {strides = array<i32>} : memref<4x342xf32, #tpu.memory_space<vmem>>, vector<4x16xf32>,
    %c0_35 = arith.constant 0 : index
    %c0_36 = arith.constant 0 : index
    %c176 = arith.constant 176 : index
    %35 = vector.load %arg1[%c0_35, %c0_36, %c176] : memref<1x4x256xf32, #tpu.memory_space<vmem>>, vector<1x4x16xf32>
    %36 = vector.shape_cast %35 : vector<1x4x16xf32> to vector<4x16xf32>
    %c0_37 = arith.constant 0 : index
    %c217 = arith.constant 217 : index
    %37 = vector.load %arg5[%c0_37, %c217] : memref<4x342xf32, #tpu.memory_space<vmem>>, vector<4x16xf32>
    tpu.vector_store %arg5[%c0_37, %c217], %36 {strides = array<i32>} : memref<4x342xf32, #tpu.memory_space<vmem>>, vector<4x16xf32>,
    %c0_38 = arith.constant 0 : index
    %c0_39 = arith.constant 0 : index
    %c192 = arith.constant 192 : index
    %38 = vector.load %arg1[%c0_38, %c0_39, %c192] : memref<1x4x256xf32, #tpu.memory_space<vmem>>, vector<1x4x16xf32>
    %39 = vector.shape_cast %38 : vector<1x4x16xf32> to vector<4x16xf32>
    %c0_40 = arith.constant 0 : index
    %c235 = arith.constant 235 : index
    %40 = vector.load %arg5[%c0_40, %c235] : memref<4x342xf32, #tpu.memory_space<vmem>>, vector<4x16xf32>
    tpu.vector_store %arg5[%c0_40, %c235], %39 {strides = array<i32>} : memref<4x342xf32, #tpu.memory_space<vmem>>, vector<4x16xf32>,
    %c0_41 = arith.constant 0 : index
    %c0_42 = arith.constant 0 : index
    %c208 = arith.constant 208 : index
    %41 = vector.load %arg1[%c0_41, %c0_42, %c208] : memref<1x4x256xf32, #tpu.memory_space<vmem>>, vector<1x4x16xf32>
    %42 = vector.shape_cast %41 : vector<1x4x16xf32> to vector<4x16xf32>
    %c0_43 = arith.constant 0 : index
    %c253 = arith.constant 253 : index
    %43 = vector.load %arg5[%c0_43, %c253] : memref<4x342xf32, #tpu.memory_space<vmem>>, vector<4x16xf32>
    tpu.vector_store %arg5[%c0_43, %c253], %42 {strides = array<i32>} : memref<4x342xf32, #tpu.memory_space<vmem>>, vector<4x16xf32>,
    %c0_44 = arith.constant 0 : index
    %c0_45 = arith.constant 0 : index
    %c224 = arith.constant 224 : index
    %44 = vector.load %arg1[%c0_44, %c0_45, %c224] : memref<1x4x256xf32, #tpu.memory_space<vmem>>, vector<1x4x16xf32>
    %45 = vector.shape_cast %44 : vector<1x4x16xf32> to vector<4x16xf32>
    %c0_46 = arith.constant 0 : index
    %c271 = arith.constant 271 : index
    %46 = vector.load %arg5[%c0_46, %c271] : memref<4x342xf32, #tpu.memory_space<vmem>>, vector<4x16xf32>
    tpu.vector_store %arg5[%c0_46, %c271], %45 {strides = array<i32>} : memref<4x342xf32, #tpu.memory_space<vmem>>, vector<4x16xf32>,
    %c0_47 = arith.constant 0 : index
    %c0_48 = arith.constant 0 : index
    %c240 = arith.constant 240 : index
    %47 = vector.load %arg1[%c0_47, %c0_48, %c240] : memref<1x4x256xf32, #tpu.memory_space<vmem>>, vector<1x4x16xf32>
    %48 = vector.shape_cast %47 : vector<1x4x16xf32> to vector<4x16xf32>
    %c0_49 = arith.constant 0 : index
    %c289 = arith.constant 289 : index
    %49 = vector.load %arg5[%c0_49, %c289] : memref<4x342xf32, #tpu.memory_space<vmem>>, vector<4x16xf32>
    tpu.vector_store %arg5[%c0_49, %c289], %48 {strides = array<i32>} : memref<4x342xf32, #tpu.memory_space<vmem>>, vector<4x16xf32>,
    %c0_50 = arith.constant 0 : index
    %c0_51 = arith.constant 0 : index
    %50 = vector.load %arg5[%c0_50, %c0_51] : memref<4x342xf32, #tpu.memory_space<vmem>>, vector<4x288xf32>
    %c0_52 = arith.constant 0 : index
    %c0_53 = arith.constant 0 : index
    %51 = vector.load %arg6[%c0_52, %c0_53] : memref<36x288xf32, #tpu.memory_space<vmem>>, vector<4x288xf32>
    tpu.vector_store %arg6[%c0_52, %c0_53], %50 {strides = array<i32>} : memref<36x288xf32, #tpu.memory_space<vmem>>, vector<4x288xf32>,
    %c0_54 = arith.constant 0 : index
    %c1 = arith.constant 1 : index
    %52 = vector.load %arg5[%c0_54, %c1] : memref<4x342xf32, #tpu.memory_space<vmem>>, vector<4x288xf32>
    %c4 = arith.constant 4 : index
    %c0_55 = arith.constant 0 : index
    %53 = vector.load %arg6[%c4, %c0_55] : memref<36x288xf32, #tpu.memory_space<vmem>>, vector<4x288xf32>
    tpu.vector_store %arg6[%c4, %c0_55], %52 {strides = array<i32>} : memref<36x288xf32, #tpu.memory_space<vmem>>, vector<4x288xf32>,
    %c0_56 = arith.constant 0 : index
    %c2 = arith.constant 2 : index
    %54 = vector.load %arg5[%c0_56, %c2] : memref<4x342xf32, #tpu.memory_space<vmem>>, vector<4x288xf32>
    %c8 = arith.constant 8 : index
    %c0_57 = arith.constant 0 : index
    %55 = vector.load %arg6[%c8, %c0_57] : memref<36x288xf32, #tpu.memory_space<vmem>>, vector<4x288xf32>
    tpu.vector_store %arg6[%c8, %c0_57], %54 {strides = array<i32>} : memref<36x288xf32, #tpu.memory_space<vmem>>, vector<4x288xf32>,
    %c0_58 = arith.constant 0 : index
    %c18 = arith.constant 18 : index
    %56 = vector.load %arg5[%c0_58, %c18] : memref<4x342xf32, #tpu.memory_space<vmem>>, vector<4x288xf32>
    %c12 = arith.constant 12 : index
    %c0_59 = arith.constant 0 : index
    %57 = vector.load %arg6[%c12, %c0_59] : memref<36x288xf32, #tpu.memory_space<vmem>>, vector<4x288xf32>
    tpu.vector_store %arg6[%c12, %c0_59], %56 {strides = array<i32>} : memref<36x288xf32, #tpu.memory_space<vmem>>, vector<4x288xf32>,
    %c0_60 = arith.constant 0 : index
    %c19_61 = arith.constant 19 : index
    %58 = vector.load %arg5[%c0_60, %c19_61] : memref<4x342xf32, #tpu.memory_space<vmem>>, vector<4x288xf32>
    %c16_62 = arith.constant 16 : index
    %c0_63 = arith.constant 0 : index
    %59 = vector.load %arg6[%c16_62, %c0_63] : memref<36x288xf32, #tpu.memory_space<vmem>>, vector<4x288xf32>
    tpu.vector_store %arg6[%c16_62, %c0_63], %58 {strides = array<i32>} : memref<36x288xf32, #tpu.memory_space<vmem>>, vector<4x288xf32>,
    %c0_64 = arith.constant 0 : index
    %c20 = arith.constant 20 : index
    %60 = vector.load %arg5[%c0_64, %c20] : memref<4x342xf32, #tpu.memory_space<vmem>>, vector<4x288xf32>
    %c20_65 = arith.constant 20 : index
    %c0_66 = arith.constant 0 : index
    %61 = vector.load %arg6[%c20_65, %c0_66] : memref<36x288xf32, #tpu.memory_space<vmem>>, vector<4x288xf32>
    tpu.vector_store %arg6[%c20_65, %c0_66], %60 {strides = array<i32>} : memref<36x288xf32, #tpu.memory_space<vmem>>, vector<4x288xf32>,
    %c0_67 = arith.constant 0 : index
    %c36 = arith.constant 36 : index
    %62 = vector.load %arg5[%c0_67, %c36] : memref<4x342xf32, #tpu.memory_space<vmem>>, vector<4x288xf32>
    %c24 = arith.constant 24 : index
    %c0_68 = arith.constant 0 : index
    %63 = vector.load %arg6[%c24, %c0_68] : memref<36x288xf32, #tpu.memory_space<vmem>>, vector<4x288xf32>
    tpu.vector_store %arg6[%c24, %c0_68], %62 {strides = array<i32>} : memref<36x288xf32, #tpu.memory_space<vmem>>, vector<4x288xf32>,
    %c0_69 = arith.constant 0 : index
    %c37_70 = arith.constant 37 : index
    %64 = vector.load %arg5[%c0_69, %c37_70] : memref<4x342xf32, #tpu.memory_space<vmem>>, vector<4x288xf32>
    %c28 = arith.constant 28 : index
    %c0_71 = arith.constant 0 : index
    %65 = vector.load %arg6[%c28, %c0_71] : memref<36x288xf32, #tpu.memory_space<vmem>>, vector<4x288xf32>
    tpu.vector_store %arg6[%c28, %c0_71], %64 {strides = array<i32>} : memref<36x288xf32, #tpu.memory_space<vmem>>, vector<4x288xf32>,
    %c0_72 = arith.constant 0 : index
    %c38 = arith.constant 38 : index
    %66 = vector.load %arg5[%c0_72, %c38] : memref<4x342xf32, #tpu.memory_space<vmem>>, vector<4x288xf32>
    %c32_73 = arith.constant 32 : index
    %c0_74 = arith.constant 0 : index
    %67 = vector.load %arg6[%c32_73, %c0_74] : memref<36x288xf32, #tpu.memory_space<vmem>>, vector<4x288xf32>
    tpu.vector_store %arg6[%c32_73, %c0_74], %66 {strides = array<i32>} : memref<36x288xf32, #tpu.memory_space<vmem>>, vector<4x288xf32>,
    %c0_75 = arith.constant 0 : index
    %c0_76 = arith.constant 0 : index
    %68 = vector.load %arg2[%c0_75, %c0_76] : memref<8x36xf32, #tpu.memory_space<vmem>>, vector<8x36xf32>
    %c0_77 = arith.constant 0 : index
    %c0_78 = arith.constant 0 : index
    %69 = vector.load %arg6[%c0_77, %c0_78] : memref<36x288xf32, #tpu.memory_space<vmem>>, vector<36x288xf32>
    %cst_79 = arith.constant dense<0.000000e+00> : vector<8x288xf32>
    %70 = tpu.matmul %68, %69, %cst_79 {dimension_numbers = #tpu.dot_dimension_numbers<[1], [0], [0], [1], [0, 0, 1, 1], [], []>} : vector<8x36xf32>, vector<36x288xf32>, vector<8x288xf32> -> vector<8x288xf32>
    %c0_80 = arith.constant 0 : index
    %c0_81 = arith.constant 0 : index
    %71 = vector.load %arg3[%c0_80, %c0_81] : memref<8x1xf32, #tpu.memory_space<vmem>>, vector<8x1xf32>
    %72 = vector.broadcast %71 : vector<8x1xf32> to vector<8x288xf32>
    %73 = arith.addf %70, %72 : vector<8x288xf32>
    %cst_82 = arith.constant 0.000000e+00 : f32
    %74 = vector.broadcast %cst_82 : f32 to vector<8x288xf32>
    %75 = arith.maximumf %73, %74 : vector<8x288xf32>
    %76 = vector.shape_cast %75 : vector<8x288xf32> to vector<1x8x288xf32>
    %c0_83 = arith.constant 0 : index
    %c0_84 = arith.constant 0 : index
    %c0_85 = arith.constant 0 : index
    %77 = vector.load %arg4[%c0_83, %c0_84, %c0_85] : memref<1x8x288xf32, #tpu.memory_space<vmem>>, vector<1x8x288xf32>
    tpu.vector_store %arg4[%c0_83, %c0_84, %c0_85], %76 {strides = array<i32>} : memref<1x8x288xf32, #tpu.memory_space<vmem>>, vector<1x8x288xf32>,
    return
  }
  func.func @transform_0(%arg0: i32) -> (i32, i32, i32) {
    %c0_i32 = arith.constant 0 : i32
    %c0_i32_0 = arith.constant 0 : i32
    %c0_i32_1 = arith.constant 0 : i32
    return %arg0, %c0_i32, %c0_i32_0 : i32, i32, i32
  }
  func.func @transform_1(%arg0: i32) -> (i32, i32) {
    %c0_i32 = arith.constant 0 : i32
    %c0_i32_0 = arith.constant 0 : i32
    %c0_i32_1 = arith.constant 0 : i32
    return %c0_i32, %c0_i32_0 : i32, i32
  }
  func.func @transform_2(%arg0: i32) -> (i32, i32) {
    %c0_i32 = arith.constant 0 : i32
    %c0_i32_0 = arith.constant 0 : i32
    %c0_i32_1 = arith.constant 0 : i32
    return %c0_i32, %c0_i32_0 : i32, i32
  }
  func.func @transform_3(%arg0: i32) -> (i32, i32, i32) {
    %c0_i32 = arith.constant 0 : i32
    %c0_i32_0 = arith.constant 0 : i32
    %c0_i32_1 = arith.constant 0 : i32
    return %arg0, %c0_i32, %c0_i32_0 : i32, i32, i32
  }
}

</mosaic_0001>

<llo_original>
// kernel: tpu_custom_call.1
$region0: #{tpu_custom_call.1}
  #allocation0 [shape = 'u32[]', space=smem, size = 0x4, offset = 0x4, fixed_abs, tag = 'smem constant byte address 0x4 - core index']
  #allocation1 [shape = 'u32[144,128]{1,0:T(1,128)}', space=vmem, size = 0x12000, scoped, tag = 'internal scratch']
  #allocation2 [shape = 'f32[4,342]{1,0:T(4,128)}', space=vmem, size = 0x1800, scoped, tag = 'scratch operand']
  #allocation3 [shape = 'f32[36,288]{1,0:T(8,128)}', space=vmem, size = 0xf000, scoped, tag = 'scratch operand']
  %s0 = inlined_call_operand.hbm [shape: f32[2,4,256], index: 0, kind: input, shape index: {}]
  %s1 = inlined_call_operand.vmem [shape: f32[8,36], index: 1, kind: input, shape index: {}]
  %s2 = inlined_call_operand.vmem [shape: f32[8,1], index: 2, kind: input, shape index: {}]
  %s3 = inlined_call_operand.hbm [shape: f32[2,8,288], index: 3, kind: output, shape index: {}]
  %s4 = sld [smem:[#allocation0]]
  $region49: #{tpu_custom_call.1} parent=0
    _
  %s6 = ssub.s32 1, %s4
  %s7 = scalar_select 0, %s6, %s4
  $region1: #{tpu_custom_call.1} parent=0
    #allocation4 [shape = 'u8[8192]{0}', space=vmem, size = 0x2000, scoped, tag = 'input window, operand 0']
    #allocation5 [shape = 's32[2]{0}', space=sflag, size = 0x8, scoped, tag = 'scoped memory for tpu_custom_call.1']
    #allocation6 [shape = 's32[2]{0}', space=sflag, size = 0x8, scoped, tag = 'scoped memory for tpu_custom_call.1']
    #allocation7 [shape = 'u8[24576]{0}', space=vmem, size = 0x6000, scoped, tag = 'output window, operand 0']
    %8 = vsyncpa [#allocation5], 0
    %s9 = scalar_lea.sflag [#allocation5], 1
    %10 = vsyncpa %s9, 0
    %11 = vsyncpa [#allocation6], 0
    %s12 = scalar_lea.sflag [#allocation6], 1
    %13 = vsyncpa %s12, 0
    loop: start=0, step=1, limit=4
    $region2: #{tpu_custom_call.1} parent=1 // loop_pre_header
      _
    $region3: #{tpu_custom_call.1} parent=1 // loop_header
      %s15 = sphi 0, %s19
      %p16 = scmp.ge.s32.totalorder %s15, 4
      %s25 = sphi 0, %s27
      %s28 = sphi 0, %s25
      %s29 = sphi 0, %s28
      %s45 = sphi 0, %s29
      %s49 = sphi 0, %s49
      %s51 = sphi 0, %s49
      %s52 = sphi 0, %s51
      %s66 = sphi 0, %s52
      %s70 = sphi 0, %s70
      %s72 = sphi 0, %s70
      %s73 = sphi 0, %s72
      %s87 = sphi 0, %s73
      %s93 = sphi 0, %s95
      %s96 = sphi 0, %s93
      %s97 = sphi 0, %s96
      %s113 = sphi 0, %s97
    $region4: #{tpu_custom_call.1} parent=1 // loop_header_branch
      %18 = sbr.rel (%p16) target = $region8
    $region5: #{tpu_custom_call.1} parent=1 // loop_body
      %s20 = ssub.s32 %s15, 1
      %s21 = ssub.s32 %s15, 2
      %s22 = sadd.s32 %s15, 1
      %s23 = ssub.s32 %s15, %s22
      %p24 = scmp.eq.s32.totalorder %s23, 0
      %s26 = sadd.s32 %s25, 1
      %s27 = scalar_select %p24, %s25, %s26
      %p30 = pneg %p24
      %p31 = scmp.eq.s32.totalorder %s15, 1
      %p32 = por %p30, %p31
      %p33 = scmp.ne.s32.totalorder %s25, %s28
      %p34 = scmp.eq.s32.totalorder %s15, 0
      %p35 = por %p33, %p34
      %p36 = scmp.ne.s32.totalorder %s25, %s28
      %p37 = scmp.eq.s32.totalorder %s20, 1
      %p38 = por %p36, %p37
      %p39 = scmp.ne.s32.totalorder %s28, %s29
      %p40 = scmp.eq.s32.totalorder %s20, 0
      %p41 = por %p39, %p40
      %p42 = scmp.ne.s32.totalorder %s28, %s29
      %p43 = scmp.eq.s32.totalorder %s21, 1
      %p44 = por %p42, %p43
      %p46 = scmp.ne.s32.totalorder %s29, %s45
      %p47 = scmp.eq.s32.totalorder %s21, 0
      %p48 = por %p46, %p47
      %s50 = sadd.s32 %s49, 1
      %p53 = scmp.eq.s32.totalorder %s15, 1
      %p54 = scmp.ne.s32.totalorder %s49, %s51
      %p55 = scmp.eq.s32.totalorder %s15, 0
      %p56 = por %p54, %p55
      %p57 = scmp.ne.s32.totalorder %s49, %s51
      %p58 = scmp.eq.s32.totalorder %s20, 1
      %p59 = por %p57, %p58
      %p60 = scmp.ne.s32.totalorder %s51, %s52
      %p61 = scmp.eq.s32.totalorder %s20, 0
      %p62 = por %p60, %p61
      %p63 = scmp.ne.s32.totalorder %s51, %s52
      %p64 = scmp.eq.s32.totalorder %s21, 1
      %p65 = por %p63, %p64
      %p67 = scmp.ne.s32.totalorder %s52, %s66
      %p68 = scmp.eq.s32.totalorder %s21, 0
      %p69 = por %p67, %p68
      %s71 = sadd.s32 %s70, 1
      %p74 = scmp.eq.s32.totalorder %s15, 1
      %p75 = scmp.ne.s32.totalorder %s70, %s72
      %p76 = scmp.eq.s32.totalorder %s15, 0
      %p77 = por %p75, %p76
      %p78 = scmp.ne.s32.totalorder %s70, %s72
      %p79 = scmp.eq.s32.totalorder %s20, 1
      %p80 = por %p78, %p79
      %p81 = scmp.ne.s32.totalorder %s72, %s73
      %p82 = scmp.eq.s32.totalorder %s20, 0
      %p83 = por %p81, %p82
      %p84 = scmp.ne.s32.totalorder %s72, %s73
      %p85 = scmp.eq.s32.totalorder %s21, 1
      %p86 = por %p84, %p85
      %p88 = scmp.ne.s32.totalorder %s73, %s87
      %p89 = scmp.eq.s32.totalorder %s21, 0
      %p90 = por %p88, %p89
      %s91 = ssub.s32 %s15, %s22
      %p92 = scmp.eq.s32.totalorder %s91, 0
      %s94 = sadd.s32 %s93, 1
      %s95 = scalar_select %p92, %s93, %s94
      %p98 = pneg %p92
      %p99 = scmp.eq.s32.totalorder %s15, 1
      %p100 = por %p98, %p99
      %p101 = scmp.ne.s32.totalorder %s93, %s96
      %p102 = scmp.eq.s32.totalorder %s15, 0
      %p103 = por %p101, %p102
      %p104 = scmp.ne.s32.totalorder %s93, %s96
      %p105 = scmp.eq.s32.totalorder %s20, 1
      %p106 = por %p104, %p105
      %p107 = scmp.ne.s32.totalorder %s96, %s97
      %p108 = scmp.eq.s32.totalorder %s20, 0
      %p109 = por %p107, %p108
      %p110 = scmp.ne.s32.totalorder %s96, %s97
      %p111 = scmp.eq.s32.totalorder %s21, 1
      %p112 = por %p110, %p111
      %p114 = scmp.ne.s32.totalorder %s97, %s113
      %p115 = scmp.eq.s32.totalorder %s21, 0
      %p116 = por %p114, %p115
      %p117 = scmp.le.s32.totalorder 1, %s15
      %p118 = scmp.lt.s32.totalorder %s15, 3
      %p119 = pnand %p117, %p118
      %p120 = pneg %p119
      // Predicated region
      $region9: #{tpu_custom_call.1} parent=5 // pred_check
        _
      $region10: #{tpu_custom_call.1} parent=5 // pred_check_branch
        %122 = sbr.rel (%p119) target = $region12
      $region11: #{tpu_custom_call.1} parent=5 // pred_region
        %s123 = ssub.s32 %s15, 1
        // Predicated region
        $region13: #{tpu_custom_call.1} parent=11 // pred_check
          %p124 = pneg %p62
        $region14: #{tpu_custom_call.1} parent=11 // pred_check_branch
          %126 = sbr.rel (%p124) target = $region16
        $region15: #{tpu_custom_call.1} parent=11 // pred_region
          _
        $region16: #{tpu_custom_call.1} parent=11 // pred_fallthru
          _
        // Predicated region
        $region17: #{tpu_custom_call.1} parent=11 // pred_check
          %p127 = pneg %p83
        $region18: #{tpu_custom_call.1} parent=11 // pred_check_branch
          %129 = sbr.rel (%p127) target = $region20
        $region19: #{tpu_custom_call.1} parent=11 // pred_region
          _
        $region20: #{tpu_custom_call.1} parent=11 // pred_fallthru
          _
      $region12: #{tpu_custom_call.1} parent=5 // pred_fallthru
        _
      %p130 = scmp.lt.s32.totalorder %s15, 2
      // Predicated region
      $region21: #{tpu_custom_call.1} parent=5 // pred_check
        %p131 = pneg %p130
      $region22: #{tpu_custom_call.1} parent=5 // pred_check_branch
        %133 = sbr.rel (%p131) target = $region24
      $region23: #{tpu_custom_call.1} parent=5 // pred_region
        // Predicated region
        $region25: #{tpu_custom_call.1} parent=23 // pred_check
          %p134 = pneg %p35
        $region26: #{tpu_custom_call.1} parent=23 // pred_check_branch
          %136 = sbr.rel (%p134) target = $region28
        $region27: #{tpu_custom_call.1} parent=23 // pred_region
          %s137 = sand.u32 %s25, 1
          %s138 = scalar_lea.sflag [#allocation5], %s137
          %s139 = sand.u32 %s25, 1
          %s140 = smul.addr %s139, 8
          %s141 = scalar_lea.vmem [#allocation4], %s140
          %s143 = ssub.s32 128, 128
          %144 = vsyncadd %s138, %s143
          %s145 = smul.addr %s15, 2
          %s146 = smul.addr %s145, 64
          %s147 = scalar_lea.hbm %s0, %s146
          %s149 = sshll.u32 %s141, 4
          %s150 = int_to_ptr.vmem [resolvable:$true] %s149
          %152 = dma.hbm_to_vmem [thread:$0]  %s147, 128, %s150, %s138
        $region28: #{tpu_custom_call.1} parent=23 // pred_fallthru
          _
      $region24: #{tpu_custom_call.1} parent=5 // pred_fallthru
        _
      %p153 = scmp.le.s32.totalorder 1, %s15
      %p154 = scmp.lt.s32.totalorder %s15, 3
      %p155 = pnand %p153, %p154
      %p156 = pneg %p155
      // Predicated region
      $region29: #{tpu_custom_call.1} parent=5 // pred_check
        _
      $region30: #{tpu_custom_call.1} parent=5 // pred_check_branch
        %158 = sbr.rel (%p155) target = $region32
      $region31: #{tpu_custom_call.1} parent=5 // pred_region
        %s159 = ssub.s32 %s15, 1
        %s160 = sand.u32 %s28, 1
        %s161 = scalar_lea.sflag [#allocation5], %s160
        %s162 = sand.u32 %s28, 1
        %s163 = smul.addr %s162, 8
        %s164 = scalar_lea.vmem [#allocation4], %s163
        // Predicated region
        $region33: #{tpu_custom_call.1} parent=31 // pred_check
          %p165 = pneg %p41
        $region34: #{tpu_custom_call.1} parent=31 // pred_check_branch
          %167 = sbr.rel (%p165) target = $region36
        $region35: #{tpu_custom_call.1} parent=31 // pred_region
          %168 = dma.done %s161, 128
        $region36: #{tpu_custom_call.1} parent=31 // pred_fallthru
          _
        %s169 = sand.u32 %s28, 1
        %s170 = scalar_lea.sflag [#allocation5], %s169
        %s171 = sand.u32 %s28, 1
        %s172 = smul.addr %s171, 8
        %s173 = scalar_lea.vmem [#allocation4], %s172
        %p174 = pneg %p41
        %p175 = pneg %p38
        %p176 = pneg %p62
        %p177 = pneg %p59
        %p178 = pneg %p83
        %p179 = pneg %p80
        %p180 = pneg %p109
        %p181 = pneg %p106
        %s182 = sand.u32 %s96, 1
        %s183 = scalar_lea.sflag [#allocation6], %s182
        %s184 = sand.u32 %s96, 1
        %s185 = smul.addr %s184, 24
        %s186 = scalar_lea.vmem [#allocation7], %s185
        %187 = vst [vmem:[#allocation2] sm:$0xff] 0.0
        %vm188 = vcmask 699392
        %189 = vst.msk [vmem:[#allocation2 + $0x8] sm:$0xf] %vm188, 0.0
        %v190 = vld [vmem:[%s164] sm:$0xf]
        %192 = vrot.lane.b32.xlu0 %v190, 19
        %v193 = vpop.permute.xlu0 %192
        %vm195 = vcmask 281752
        %196 = vst.msk [vmem:[#allocation2] sm:$0xf] %vm195, %v193
        %v197 = vld [vmem:[%s164] sm:$0xf]
        %199 = vrot.lane.b32.xlu0 %v197, 21
        %v200 = vpop.permute.xlu0 %199
        %vm202 = vcmask 429352
        %203 = vst.msk [vmem:[#allocation2] sm:$0xf] %vm202, %v200
        %v204 = vld [vmem:[%s164] sm:$0xf]
        %206 = vrot.lane.b32.xlu0 %v204, 23
        %v207 = vpop.permute.xlu0 %206
        %vm209 = vcmask 576952
        %210 = vst.msk [vmem:[#allocation2] sm:$0xf] %vm209, %v207
        %v211 = vld [vmem:[%s164] sm:$0xf]
        %213 = vrot.lane.b32.xlu0 %v211, 25
        %v214 = vpop.permute.xlu0 %213
        %vm216 = vcmask 724552
        %217 = vst.msk [vmem:[#allocation2] sm:$0xf] %vm216, %v214
        %v218 = vld [vmem:[%s164] sm:$0xf]
        %220 = vrot.lane.b32.xlu0 %v218, 27
        %v221 = vpop.permute.xlu0 %220
        %vm223 = vcmask 872152
        %224 = vst.msk [vmem:[#allocation2] sm:$0xf] %vm223, %v221
        %v225 = vld [vmem:[%s164] sm:$0xf]
        %227 = vrot.lane.b32.xlu0 %v225, 29
        %v228 = vpop.permute.xlu0 %227
        %vm230 = vcmask 1019752
        %231 = vst.msk [vmem:[#allocation2] sm:$0xf] %vm230, %v228
        %v232 = vld [vmem:[%s164] sm:$0xf]
        %234 = vrot.lane.b32.xlu0 %v232, 31
        %v235 = vpop.permute.xlu0 %234
        %v236 = vrot.slane %v235, 4
        %vm237 = vcmask 252928
        %v238 = vsel %vm237, %v236, %v235
        %vm240 = vcmask 1044472
        %vm241 = vcmask 121860
        %vm242 = vmor %vm241, %vm240
        %243 = vst.msk [vmem:[#allocation2] sm:$0xff] %vm242, %v238
        %v244 = vld [vmem:[%s164] sm:$0xf]
        %246 = vrot.lane.b32.xlu0 %v244, 33
        %v247 = vpop.permute.xlu0 %246
        %vm249 = vcmask 265352
        %250 = vst.msk [vmem:[#allocation2 + $0x4] sm:$0xf] %vm249, %v247
        %v251 = vld [vmem:[%s164 + $0x4] sm:$0xf]
        %253 = vrot.lane.b32.xlu0 %v251, 35
        %v254 = vpop.permute.xlu0 %253
        %vm256 = vcmask 412952
        %257 = vst.msk [vmem:[#allocation2 + $0x4] sm:$0xf] %vm256, %v254
        %v258 = vld [vmem:[%s164 + $0x4] sm:$0xf]
        %260 = vrot.lane.b32.xlu0 %v258, 37
        %v261 = vpop.permute.xlu0 %260
        %vm263 = vcmask 560552
        %264 = vst.msk [vmem:[#allocation2 + $0x4] sm:$0xf] %vm263, %v261
        %v265 = vld [vmem:[%s164 + $0x4] sm:$0xf]
        %267 = vrot.lane.b32.xlu0 %v265, 39
        %v268 = vpop.permute.xlu0 %267
        %vm270 = vcmask 708152
        %271 = vst.msk [vmem:[#allocation2 + $0x4] sm:$0xf] %vm270, %v268
        %v272 = vld [vmem:[%s164 + $0x4] sm:$0xf]
        %274 = vrot.lane.b32.xlu0 %v272, 41
        %v275 = vpop.permute.xlu0 %274
        %vm277 = vcmask 855752
        %278 = vst.msk [vmem:[#allocation2 + $0x4] sm:$0xf] %vm277, %v275
        %v279 = vld [vmem:[%s164 + $0x4] sm:$0xf]
        %281 = vrot.lane.b32.xlu0 %v279, 43
        %v282 = vpop.permute.xlu0 %281
        %vm284 = vcmask 1003352
        %285 = vst.msk [vmem:[#allocation2 + $0x4] sm:$0xf] %vm284, %v282
        %v286 = vld [vmem:[%s164 + $0x4] sm:$0xf]
        %288 = vrot.lane.b32.xlu0 %v286, 45
        %v289 = vpop.permute.xlu0 %288
        %v290 = vrot.slane %v289, 4
        %vm291 = vcmask 367616
        %v292 = vsel %vm291, %v290, %v289
        %vm294 = vcmask 1044456
        %vm295 = vcmask 105476
        %vm296 = vmor %vm295, %vm294
        %297 = vst.msk [vmem:[#allocation2 + $0x4] sm:$0xff] %vm296, %v292
        %v298 = vld [vmem:[%s164 + $0x4] sm:$0xf]
        %300 = vrot.lane.b32.xlu0 %v298, 47
        %v301 = vpop.permute.xlu0 %300
        %vm303 = vcmask 248952
        %304 = vst.msk [vmem:[#allocation2 + $0x8] sm:$0xf] %vm303, %v301
        %v305 = vld [vmem:[%s164 + $0x4] sm:$0xf]
        %307 = vrot.lane.b32.xlu0 %v305, 49
        %v308 = vpop.permute.xlu0 %307
        %vm310 = vcmask 396552
        %311 = vst.msk [vmem:[#allocation2 + $0x8] sm:$0xf] %vm310, %v308
        %v312 = vld [vmem:[#allocation2] sm:$0xff]
        %v313 = vld [vmem:[#allocation2 + $0x8] sm:$0xf]
        %v315 = vcombine.high %v312, %v312
        %317 = vst [vmem:[#allocation3] sm:$0xf] %v312
        %318 = vst [vmem:[#allocation3 + $0x8] sm:$0xf] %v315
        %vm319 = vcmask 257024
        %320 = vst.msk [vmem:[#allocation3 + $0x10] sm:$0xf] %vm319, %v313
        %v321 = vld [vmem:[#allocation2] sm:$0xff]
        %v322 = vld [vmem:[#allocation2 + $0x8] sm:$0xf]
        %v325 = vcombine.low %v321, %v321
        %v326 = vcombine.low %v322, %v322
        %327 = vrot.lane.b32.xlu0 %v325, 127
        %v328 = vpop.permute.xlu0 %327
        %329 = vrot.lane.b32.xlu0 %v321, 127
        %v330 = vpop.permute.xlu0 %329
        %331 = vrot.lane.b32.xlu0 %v326, 127
        %v332 = vpop.permute.xlu0 %331
        %vm333 = vcmask 1039360
        %v334 = vsel %vm333, %v328, %v330
        %v335 = vsel %vm333, %v330, %v332
        %339 = vst [vmem:[#allocation3] sm:$0xf0] %v334
        %340 = vst [vmem:[#allocation3 + $0x8] sm:$0xf0] %v335
        %vm341 = vcmask 261124
        %342 = vst.msk [vmem:[#allocation3 + $0x10] sm:$0xf0] %vm341, %v332
        %v343 = vld [vmem:[#allocation2] sm:$0xff]
        %v344 = vld [vmem:[#allocation2 + $0x8] sm:$0xf]
        %v347 = vcombine.high %v343, %v343
        %348 = vrot.lane.b32.xlu0 %v343, 126
        %v349 = vpop.permute.xlu0 %348
        %350 = vrot.lane.b32.xlu0 %v347, 126
        %v351 = vpop.permute.xlu0 %350
        %352 = vrot.lane.b32.xlu0 %v344, 126
        %v353 = vpop.permute.xlu0 %352
        %vm354 = vcmask 1031168
        %v355 = vsel %vm354, %v349, %v351
        %v356 = vsel %vm354, %v351, %v353
        %360 = vst [vmem:[#allocation3 + $0x18] sm:$0xf] %v355
        %361 = vst [vmem:[#allocation3 + $0x20] sm:$0xf] %v356
        %362 = vst.msk [vmem:[#allocation3 + $0x28] sm:$0xf] %vm319, %v353
        %v363 = vld [vmem:[#allocation2] sm:$0xff]
        %v364 = vld [vmem:[#allocation2 + $0x8] sm:$0xf]
        %v367 = vcombine.low %v363, %v363
        %v368 = vcombine.low %v364, %v364
        %369 = vrot.lane.b32.xlu0 %v367, 110
        %v370 = vpop.permute.xlu0 %369
        %371 = vrot.lane.b32.xlu0 %v363, 110
        %v372 = vpop.permute.xlu0 %371
        %373 = vrot.lane.b32.xlu0 %v368, 110
        %v374 = vpop.permute.xlu0 %373
        %vm375 = vcmask 900096
        %v376 = vsel %vm375, %v370, %v372
        %v377 = vsel %vm375, %v372, %v374
        %381 = vst [vmem:[#allocation3 + $0x18] sm:$0xf0] %v376
        %382 = vst [vmem:[#allocation3 + $0x20] sm:$0xf0] %v377
        %383 = vst.msk [vmem:[#allocation3 + $0x28] sm:$0xf0] %vm341, %v374
        %v384 = vld [vmem:[#allocation2] sm:$0xff]
        %v385 = vld [vmem:[#allocation2 + $0x8] sm:$0xf]
        %v388 = vcombine.high %v384, %v384
        %389 = vrot.lane.b32.xlu0 %v384, 109
        %v390 = vpop.permute.xlu0 %389
        %391 = vrot.lane.b32.xlu0 %v388, 109
        %v392 = vpop.permute.xlu0 %391
        %393 = vrot.lane.b32.xlu0 %v385, 109
        %v394 = vpop.permute.xlu0 %393
        %vm395 = vcmask 891904
        %v396 = vsel %vm395, %v390, %v392
        %v397 = vsel %vm395, %v392, %v394
        %401 = vst [vmem:[#allocation3 + $0x30] sm:$0xf] %v396
        %402 = vst [vmem:[#allocation3 + $0x38] sm:$0xf] %v397
        %403 = vst.msk [vmem:[#allocation3 + $0x40] sm:$0xf] %vm319, %v394
        %v404 = vld [vmem:[#allocation2] sm:$0xff]
        %v405 = vld [vmem:[#allocation2 + $0x8] sm:$0xf]
        %v408 = vcombine.low %v404, %v404
        %v409 = vcombine.low %v405, %v405
        %410 = vrot.lane.b32.xlu0 %v408, 108
        %v411 = vpop.permute.xlu0 %410
        %412 = vrot.lane.b32.xlu0 %v404, 108
        %v413 = vpop.permute.xlu0 %412
        %414 = vrot.lane.b32.xlu0 %v409, 108
        %v415 = vpop.permute.xlu0 %414
        %vm416 = vcmask 883712
        %v417 = vsel %vm416, %v411, %v413
        %v418 = vsel %vm416, %v413, %v415
        %422 = vst [vmem:[#allocation3 + $0x30] sm:$0xf0] %v417
        %423 = vst [vmem:[#allocation3 + $0x38] sm:$0xf0] %v418
        %424 = vst.msk [vmem:[#allocation3 + $0x40] sm:$0xf0] %vm341, %v415
        %v425 = vld [vmem:[#allocation2] sm:$0xff]
        %v426 = vld [vmem:[#allocation2 + $0x8] sm:$0xf]
        %v429 = vcombine.high %v425, %v425
        %430 = vrot.lane.b32.xlu0 %v425, 92
        %v431 = vpop.permute.xlu0 %430
        %432 = vrot.lane.b32.xlu0 %v429, 92
        %v433 = vpop.permute.xlu0 %432
        %434 = vrot.lane.b32.xlu0 %v426, 92
        %v435 = vpop.permute.xlu0 %434
        %vm436 = vcmask 752640
        %v437 = vsel %vm436, %v431, %v433
        %v438 = vsel %vm436, %v433, %v435
        %442 = vst [vmem:[#allocation3 + $0x48] sm:$0xf] %v437
        %443 = vst [vmem:[#allocation3 + $0x50] sm:$0xf] %v438
        %444 = vst.msk [vmem:[#allocation3 + $0x58] sm:$0xf] %vm319, %v435
        %v445 = vld [vmem:[#allocation2] sm:$0xff]
        %v446 = vld [vmem:[#allocation2 + $0x8] sm:$0xf]
        %v449 = vcombine.low %v445, %v445
        %v450 = vcombine.low %v446, %v446
        %451 = vrot.lane.b32.xlu0 %v449, 91
        %v452 = vpop.permute.xlu0 %451
        %453 = vrot.lane.b32.xlu0 %v445, 91
        %v454 = vpop.permute.xlu0 %453
        %455 = vrot.lane.b32.xlu0 %v450, 91
        %v456 = vpop.permute.xlu0 %455
        %vm457 = vcmask 744448
        %v458 = vsel %vm457, %v452, %v454
        %v459 = vsel %vm457, %v454, %v456
        %463 = vst [vmem:[#allocation3 + $0x48] sm:$0xf0] %v458
        %464 = vst [vmem:[#allocation3 + $0x50] sm:$0xf0] %v459
        %465 = vst.msk [vmem:[#allocation3 + $0x58] sm:$0xf0] %vm341, %v456
        %v466 = vld [vmem:[#allocation2] sm:$0xff]
        %v467 = vld [vmem:[#allocation2 + $0x8] sm:$0xf]
        %v470 = vcombine.high %v466, %v466
        %471 = vrot.lane.b32.xlu0 %v466, 90
        %v472 = vpop.permute.xlu0 %471
        %473 = vrot.lane.b32.xlu0 %v470, 90
        %v474 = vpop.permute.xlu0 %473
        %475 = vrot.lane.b32.xlu0 %v467, 90
        %v476 = vpop.permute.xlu0 %475
        %vm477 = vcmask 736256
        %v478 = vsel %vm477, %v472, %v474
        %v479 = vsel %vm477, %v474, %v476
        %483 = vst [vmem:[#allocation3 + $0x60] sm:$0xf] %v478
        %484 = vst [vmem:[#allocation3 + $0x68] sm:$0xf] %v479
        %485 = vst.msk [vmem:[#allocation3 + $0x70] sm:$0xf] %vm319, %v476
        %v486 = vld [vmem:[%s1] sm:$0xff]
        %v487 = vld [vmem:[#allocation3] sm:$0xff]
        %v488 = vld [vmem:[#allocation3 + $0x8] sm:$0xff]
        %v489 = vld [vmem:[#allocation3 + $0x10] sm:$0xff]
        %v490 = vld [vmem:[#allocation3 + $0x18] sm:$0xff]
        %v491 = vld [vmem:[#allocation3 + $0x20] sm:$0xff]
        %v492 = vld [vmem:[#allocation3 + $0x28] sm:$0xff]
        %v493 = vld [vmem:[#allocation3 + $0x30] sm:$0xff]
        %v494 = vld [vmem:[#allocation3 + $0x38] sm:$0xff]
        %v495 = vld [vmem:[#allocation3 + $0x40] sm:$0xff]
        %v496 = vld [vmem:[#allocation3 + $0x48] sm:$0xff]
        %v497 = vld [vmem:[#allocation3 + $0x50] sm:$0xff]
        %v498 = vld [vmem:[#allocation3 + $0x58] sm:$0xff]
        %v499 = vld [vmem:[#allocation3 + $0x60] sm:$0xf]
        %v500 = vld [vmem:[#allocation3 + $0x68] sm:$0xf]
        %v501 = vld [vmem:[#allocation3 + $0x70] sm:$0xf]
        %v502 = vld [vmem:[%s2] sm:$0xff]
        %504 = vset.pattern.permute.xlu0 0
        %505 = vperm.xlu0 %504, %v502
        %v506 = vpop.permute.xlu0 %505
        %vm508 = vcmask 293888
        %v510 = vsel %vm508, %v486, 0
        %vm512 = vcmask 1043456
        %v514 = vsel %vm512, %v499, 0
        %v517 = vsel %vm512, %v500, 0
        %v520 = vsel %vm512, %v501, 0
        %522 = vmatprep.subr.mxu0 %v488
        %523 = vmatpush1.msra.mxu0 %v487
        %524 = vmatprep.subr.mxu0 %v491
        %525 = vmatpush1.msra.mxu0 %v490
        %526 = vmatprep.subr.mxu0 %v494
        %527 = vmatpush1.msra.mxu0 %v493
        %528 = vmatprep.subr.mxu0 %v497
        %529 = vmatpush1.msra.mxu0 %v496
        %530 = vmatprep.subr.mxu0 %v517
        %531 = vmatpush1.msra.mxu0 %v514
        %532 = vmatprep.subr.mxu0 0.0
        %533 = vmatpush1.msra.mxu0 0.0
        %534 = vmatprep.subr.mxu0 0.0
        %535 = vmatpush1.msra.mxu0 0.0
        %536 = vmatprep.subr.mxu0 0.0
        %537 = vmatpush1.msra.mxu0 0.0
        %538 = vmatprep.subr.mxu0 0.0
        %539 = vmatpush1.msra.mxu0 0.0
        %540 = vmatprep.subr.mxu0 0.0
        %541 = vmatpush1.msra.mxu0 0.0
        %542 = vmatprep.subr.mxu0 0.0
        %543 = vmatpush1.msra.mxu0 0.0
        %544 = vmatprep.subr.mxu0 0.0
        %545 = vmatpush1.msra.mxu0 0.0
        %546 = vmatprep.subr.mxu0 0.0
        %547 = vmatpush1.msra.mxu0 0.0
        %548 = vmatprep.subr.mxu0 0.0
        %549 = vmatpush1.msra.mxu0 0.0
        %550 = vmatprep.subr.mxu0 0.0
        %551 = vmatpush1.msra.mxu0 0.0
        %552 = vmatprep.subr.mxu0 0.0
        %553 = vmatpush1.msra.mxu0 0.0
        %554 = vmatprep.subr.mxu0 0.0
        %555 = vmatpush1.msra.mxu0 0.0
        %556 = vmatprep.subr.mxu0 0.0
        %557 = vmatpush1.msra.mxu0 0.0
        %558 = vmatprep.subr.mxu0 0.0
        %559 = vmatpush1.msra.mxu0 0.0
        %560 = vmatprep.subr.mxu0 0.0
        %561 = vmatpush1.msra.mxu0 0.0
        %562 = vmatprep.subr.mxu0 0.0
        %563 = vmatpush1.msra.mxu0 0.0
        %564 = vmatprep.subr.mxu0 0.0
        %565 = vmatpush1.msra.mxu0 0.0
        %566 = vmatprep.subr.mxu0 0.0
        %567 = vmatpush1.msra.mxu0 0.0
        %568 = vmatprep.subr.mxu0 0.0
        %569 = vmatpush1.msra.mxu0 0.0
        %570 = vmatprep.subr.mxu0 0.0
        %571 = vmatpush1.msra.mxu0 0.0
        %572 = vmatprep.subr.mxu0 0.0
        %573 = vmatpush1.msra.mxu0 0.0
        %574 = vmatprep.subr.mxu0 0.0
        %575 = vmatpush1.msra.mxu0 0.0
        %576 = vmatprep.subr.mxu0 0.0
        %577 = vmatpush1.msra.mxu0 0.0
        %578 = vmatprep.subr.mxu0 0.0
        %579 = vmatpush1.msra.mxu0 0.0
        %580 = vmatprep.subr.mxu0 0.0
        %581 = vmatpush1.msra.mxu0 0.0
        %582 = vmatprep.subr.mxu0 0.0
        %583 = vmatpush1.msra.mxu0 0.0
        %584 = vmatprep.subr.mxu0 0.0
        %585 = vmatpush1.msra.mxu0 0.0
        %586 = vmatprep.mubr.f32.mxu0 0.0
        %587 = vmatmul.mubr.f32.gmra.mrb[0].mxu0 %v510
        %v588 = vpop.f32.mrb[0].mxu0
        %v589 = vadd.f32 %v506, %v588
        %v590 = vpop.f32.mrb[0].mxu0
        %v591 = vadd.f32 %v506, %v590
        %592 = vdwg.mxu0
        %593 = vmatprep.subr.mxu0 0.0
        %594 = vmatpush1.msra.mxu0 %v489
        %595 = vmatprep.subr.mxu0 0.0
        %596 = vmatpush1.msra.mxu0 %v492
        %597 = vmatprep.subr.mxu0 0.0
        %598 = vmatpush1.msra.mxu0 %v495
        %599 = vmatprep.subr.mxu0 0.0
        %600 = vmatpush1.msra.mxu0 %v498
        %601 = vmatprep.subr.mxu0 0.0
        %602 = vmatpush1.msra.mxu0 %v520
        %603 = vmatprep.subr.mxu0 0.0
        %604 = vmatpush1.msra.mxu0 0.0
        %605 = vmatprep.subr.mxu0 0.0
        %606 = vmatpush1.msra.mxu0 0.0
        %607 = vmatprep.subr.mxu0 0.0
        %608 = vmatpush1.msra.mxu0 0.0
        %609 = vmatprep.subr.mxu0 0.0
        %610 = vmatpush1.msra.mxu0 0.0
        %611 = vmatprep.subr.mxu0 0.0
        %612 = vmatpush1.msra.mxu0 0.0
        %613 = vmatprep.subr.mxu0 0.0
        %614 = vmatpush1.msra.mxu0 0.0
        %615 = vmatprep.subr.mxu0 0.0
        %616 = vmatpush1.msra.mxu0 0.0
        %617 = vmatprep.subr.mxu0 0.0
        %618 = vmatpush1.msra.mxu0 0.0
        %619 = vmatprep.subr.mxu0 0.0
        %620 = vmatpush1.msra.mxu0 0.0
        %621 = vmatprep.subr.mxu0 0.0
        %622 = vmatpush1.msra.mxu0 0.0
        %623 = vmatprep.subr.mxu0 0.0
        %624 = vmatpush1.msra.mxu0 0.0
        %625 = vmatprep.subr.mxu0 0.0
        %626 = vmatpush1.msra.mxu0 0.0
        %627 = vmatprep.subr.mxu0 0.0
        %628 = vmatpush1.msra.mxu0 0.0
        %629 = vmatprep.subr.mxu0 0.0
        %630 = vmatpush1.msra.mxu0 0.0
        %631 = vmatprep.subr.mxu0 0.0
        %632 = vmatpush1.msra.mxu0 0.0
        %633 = vmatprep.subr.mxu0 0.0
        %634 = vmatpush1.msra.mxu0 0.0
        %635 = vmatprep.subr.mxu0 0.0
        %636 = vmatpush1.msra.mxu0 0.0
        %637 = vmatprep.subr.mxu0 0.0
        %638 = vmatpush1.msra.mxu0 0.0
        %639 = vmatprep.subr.mxu0 0.0
        %640 = vmatpush1.msra.mxu0 0.0
        %641 = vmatprep.subr.mxu0 0.0
        %642 = vmatpush1.msra.mxu0 0.0
        %643 = vmatprep.subr.mxu0 0.0
        %644 = vmatpush1.msra.mxu0 0.0
        %645 = vmatprep.subr.mxu0 0.0
        %646 = vmatpush1.msra.mxu0 0.0
        %647 = vmatprep.subr.mxu0 0.0
        %648 = vmatpush1.msra.mxu0 0.0
        %649 = vmatprep.subr.mxu0 0.0
        %650 = vmatpush1.msra.mxu0 0.0
        %651 = vmatprep.subr.mxu0 0.0
        %652 = vmatpush1.msra.mxu0 0.0
        %653 = vmatprep.subr.mxu0 0.0
        %654 = vmatpush1.msra.mxu0 0.0
        %655 = vmatprep.subr.mxu0 0.0
        %656 = vmatpush1.msra.mxu0 0.0
        %657 = vmatprep.mubr.f32.mxu0 0.0
        %658 = vmatmul.mubr.f32.gmra.mrb[0].mxu0 %v510
        %v659 = vpop.f32.mrb[0].mxu0
        %v660 = vadd.f32 %v506, %v659
        %v661 = vpop.f32.mrb[0].mxu0
        %662 = vdwg.mxu0
        %v663 = vmax.f32 %v589, 0.0
        %v664 = vmax.f32 %v591, 0.0
        %v665 = vmax.f32 %v660, 0.0
        %666 = vst [vmem:[%s186] sm:$0xff] %v663
        %667 = vst [vmem:[%s186 + $0x8] sm:$0xff] %v664
        %vm668 = vcmask 261120
        %669 = vst.msk [vmem:[%s186 + $0x10] sm:$0xff] %vm668, %v665
        %s670 = sand.u32 %s96, 1
        %s671 = scalar_lea.sflag [#allocation6], %s670
        %s672 = sand.u32 %s96, 1
        %s673 = smul.addr %s672, 24
        %s674 = scalar_lea.vmem [#allocation7], %s673
        // Predicated region
        $region37: #{tpu_custom_call.1} parent=31 // pred_check
          %p675 = pneg %p106
        $region38: #{tpu_custom_call.1} parent=31 // pred_check_branch
          %677 = sbr.rel (%p675) target = $region40
        $region39: #{tpu_custom_call.1} parent=31 // pred_region
          %s679 = ssub.s32 384, 384
          %680 = vsyncadd %s671, %s679
          %s681 = smul.addr %s20, 3
          %s682 = smul.addr %s681, 128
          %s683 = scalar_lea.hbm %s3, %s682
          %s685 = sshll.u32 %s674, 4
          %s686 = int_to_ptr.vmem [resolvable:$true] %s685
          %688 = dma.vmem_to_hbm [thread:$0]  %s686, 384, %s683, %s671
        $region40: #{tpu_custom_call.1} parent=31 // pred_fallthru
          _
      $region32: #{tpu_custom_call.1} parent=5 // pred_fallthru
        _
      %p689 = scmp.le.s32.totalorder 2, %s15
      // Predicated region
      $region41: #{tpu_custom_call.1} parent=5 // pred_check
        %p690 = pneg %p689
      $region42: #{tpu_custom_call.1} parent=5 // pred_check_branch
        %692 = sbr.rel (%p690) target = $region44
      $region43: #{tpu_custom_call.1} parent=5 // pred_region
        %s693 = ssub.s32 %s15, 2
        // Predicated region
        $region45: #{tpu_custom_call.1} parent=43 // pred_check
          %p694 = pneg %p112
        $region46: #{tpu_custom_call.1} parent=43 // pred_check_branch
          %696 = sbr.rel (%p694) target = $region48
        $region47: #{tpu_custom_call.1} parent=43 // pred_region
          %s697 = sand.u32 %s97, 1
          %s698 = scalar_lea.sflag [#allocation6], %s697
          %s699 = sand.u32 %s97, 1
          %s700 = smul.addr %s699, 24
          %s701 = scalar_lea.vmem [#allocation7], %s700
          %702 = dma.done %s698, 384
        $region48: #{tpu_custom_call.1} parent=43 // pred_fallthru
          _
      $region44: #{tpu_custom_call.1} parent=5 // pred_fallthru
        _
    $region6: #{tpu_custom_call.1} parent=1 // loop_footer
      %s19 = sadd.s32 1, %s15
    $region7: #{tpu_custom_call.1} parent=1 // loop_footer_branch
      %14 = sbr.rel target = $region3
    $region8: #{tpu_custom_call.1} parent=1 // loop_exit
      _
    %703 = vsyncpa [#allocation5], 1
    %s704 = scalar_lea.sflag [#allocation5], 1
    %705 = vsyncpa %s704, 1
    %706 = vsyncpa [#allocation6], 1
    %s707 = scalar_lea.sflag [#allocation6], 1
    %708 = vsyncpa %s707, 1

</llo_original>
